<compile_context>
chip_gen: v7x
topology: tpu7x:2x2x1
jax: 0.10.0
libtpu: 0.0.40
codegen_flags: <defaults>
</compile_context>

<pallas_src>
import jax
import jax.numpy as jnp
from jax.experimental import pallas as pl
from jax.experimental.pallas import tpu as pltpu

EMBEDDING_DIM = 128
HIDDEN_DIM = 128


def _round_up(n, m):
    return ((n + m - 1) // m) * m


def _choose_tb(batch, max_tb):
    """Pick a batch tile: as large as allowed, multiple of 8, and prefer
    >= 2 grid steps (v7x has 2 TensorCores sharing the 'parallel' axis)."""
    bp = _round_up(batch, 8)
    tb = min(max_tb, bp)
    if bp // tb < 2 and bp >= 16:
        tb = _round_up(pl.cdiv(bp, 2), 8)
    return tb


def mlp_kernel(x_ref, w1_ref, b1_ref, w2_ref, b2_ref, w3_ref, b3_ref, o_ref):
    # x_ref: (tb, 2E) bf16      w1: (2E, H) bf16   b1: (1, H) f32
    # w2: (H, H) bf16           b2: (1, H) f32
    # w3: (1, H) f32 (row)      b3: (1, 1) f32 in SMEM
    x = x_ref[...]

    # fc1 + ReLU (dropout is identity at inference) — bf16 MXU, f32 accumulate.
    h1 = jnp.dot(x, w1_ref[...], preferred_element_type=jnp.float32)
    h1 = jnp.maximum(h1 + b1_ref[...], 0.0)

    # fc2 + ReLU (dropout is identity at inference).
    h2 = jnp.dot(h1.astype(w2_ref.dtype), w2_ref[...],
                 preferred_element_type=jnp.float32)
    h2 = jnp.maximum(h2 + b2_ref[...], 0.0)

    # output layer (128 -> 1): VPU multiply + lane reduction, MXU stays free.
    out = jnp.sum(h2 * w3_ref[...], axis=-1, keepdims=True) + b3_ref[0, 0]
    o_ref[...] = out.astype(o_ref.dtype)


def binary_classification_forward(x, params, *, max_tb=512,
                                  compute_dtype=jnp.bfloat16):
    """x: (B, 2*EMBEDDING_DIM) float32. Returns logits (B, 1) float32."""
    w1, b1, w2, b2, w3, b3 = params
    B, F = x.shape
    assert F == 2 * EMBEDDING_DIM

    tb = _choose_tb(B, max_tb)
    Bp = _round_up(B, tb)

    xp = x if Bp == B else jnp.pad(x, ((0, Bp - B), (0, 0)))
    xp = xp.astype(compute_dtype)

    # Cast the big weights in the wrapper so HBM copies entering the kernel
    # are already in the compute dtype. Small tensors stay f32.
    w1c = w1.astype(compute_dtype)
    w2c = w2.astype(compute_dtype)
    w3c = w3.astype(jnp.float32)
    b1c = b1.astype(jnp.float32)
    b2c = b2.astype(jnp.float32)
    b3c = b3.astype(jnp.float32)

    grid = (Bp // tb,)
    out = pl.pallas_call(
        mlp_kernel,
        out_shape=jax.ShapeDtypeStruct((Bp, 1), jnp.float32),
        grid_spec=pltpu.PrefetchScalarGridSpec(
            num_scalar_prefetch=0,
            grid=grid,
            in_specs=[
                pl.BlockSpec((tb, F), lambda i: (i, 0)),                   # x tile
                pl.BlockSpec((F, HIDDEN_DIM), lambda i: (0, 0)),           # w1 (resident)
                pl.BlockSpec((1, HIDDEN_DIM), lambda i: (0, 0)),           # b1
                pl.BlockSpec((HIDDEN_DIM, HIDDEN_DIM), lambda i: (0, 0)),  # w2 (resident)
                pl.BlockSpec((1, HIDDEN_DIM), lambda i: (0, 0)),           # b2
                pl.BlockSpec((1, HIDDEN_DIM), lambda i: (0, 0)),           # w3 row (resident)
                pl.BlockSpec(memory_space=pltpu.MemorySpace.SMEM),         # b3 scalar
            ],
            out_specs=pl.BlockSpec((tb, 1), lambda i: (i, 0)),
        ),
        compiler_params=pltpu.CompilerParams(
            dimension_semantics=("parallel",),
        ),
    )(xp, w1c, b1c, w2c, b2c, w3c, b3c)

    return out[:B]


def init_params(key):
    """Deterministic parameter init mimicking nn.Linear shapes.
    w1/w2 stored (in, out); w3 stored as a (1, H) row; biases broadcastable."""
    k1, k2, k3, k4, k5, k6 = jax.random.split(key, 6)
    in1 = 2 * EMBEDDING_DIM
    w1 = jax.random.normal(k1, (in1, HIDDEN_DIM), jnp.float32) * (1.0 / jnp.sqrt(in1))
    b1 = jax.random.normal(k2, (1, HIDDEN_DIM), jnp.float32) * 0.01
    w2 = jax.random.normal(k3, (HIDDEN_DIM, HIDDEN_DIM), jnp.float32) * (1.0 / jnp.sqrt(HIDDEN_DIM))
    b2 = jax.random.normal(k4, (1, HIDDEN_DIM), jnp.float32) * 0.01
    w3 = jax.random.normal(k5, (1, HIDDEN_DIM), jnp.float32) * (1.0 / jnp.sqrt(HIDDEN_DIM))
    b3 = jax.random.normal(k6, (1, 1), jnp.float32) * 0.01
    return (w1, b1, w2, b2, w3, b3)


def reference_forward(x, params, compute_dtype=jnp.bfloat16):
    """Pure-JAX reference mirroring the kernel's precision policy
    (bf16 inputs/weights, f32 accumulation; dropout = identity in eval)."""
    w1, b1, w2, b2, w3, b3 = params
    herb_emb = x[:, :EMBEDDING_DIM]
    target_emb = x[:, EMBEDDING_DIM:]
    xc = jnp.concatenate((herb_emb, target_emb), axis=1)  # identity re-concat
    xc = xc.astype(compute_dtype)
    h = jnp.dot(xc, w1.astype(compute_dtype), preferred_element_type=jnp.float32) + b1
    h = jax.nn.relu(h)
    h = jnp.dot(h.astype(compute_dtype), w2.astype(compute_dtype),
                preferred_element_type=jnp.float32) + b2
    h = jax.nn.relu(h)
    out = jnp.sum(h * w3.astype(jnp.float32), axis=-1, keepdims=True) + b3
    return out


if __name__ == "__main__":
    key = jax.random.PRNGKey(0)
    kx, kp = jax.random.split(key)

    # Small batch that is NOT a multiple of 8 — exercises padding + the
    # 2-step-grid tiling path.
    B = 20
    x = jax.random.normal(kx, (B, 2 * EMBEDDING_DIM), jnp.float32)
    params = init_params(kp)

    out = binary_classification_forward(x, params)
    out = jax.block_until_ready(out)

    ref = reference_forward(x, params)
    assert out.shape == (B, 1)
    max_err = jnp.max(jnp.abs(out - ref))
    assert jnp.allclose(out, ref, atol=1e-3, rtol=1e-3), (
        f"mismatch: max abs err {max_err}"
    )
    print("KERNEL_OK")
</pallas_src>

<mosaic_0001>
module attributes {stable_mosaic.version = 11 : i64} {
  func.func @mlp_kernel(%arg0: i32, %arg1: memref<16x256xbf16, #tpu.memory_space<vmem>>, %arg2: memref<256x128xbf16, #tpu.memory_space<vmem>>, %arg3: memref<1x128xf32, #tpu.memory_space<vmem>>, %arg4: memref<128x128xbf16, #tpu.memory_space<vmem>>, %arg5: memref<1x128xf32, #tpu.memory_space<vmem>>, %arg6: memref<1x128xf32, #tpu.memory_space<vmem>>, %arg7: memref<1x1xf32, #tpu.memory_space<smem>>, %arg8: memref<16x1xf32, #tpu.memory_space<vmem>>) attributes {dimension_semantics = [#tpu.dimension_semantics<parallel>], iteration_bounds = array<i64: 2>, scalar_prefetch = 0 : i64, scratch_operands = 0 : i64, tpu.core_type = #tpu.core_type<tc>, window_params = [{transform_indices = @transform_0, window_bounds = array<i64: 16, 256>}, {pipeline_mode = #tpu.pipeline_mode<synchronous>, transform_indices = @transform_1, window_bounds = array<i64: 256, 128>}, {pipeline_mode = #tpu.pipeline_mode<synchronous>, transform_indices = @transform_2, window_bounds = array<i64: 1, 128>}, {pipeline_mode = #tpu.pipeline_mode<synchronous>, transform_indices = @transform_3, window_bounds = array<i64: 128, 128>}, {pipeline_mode = #tpu.pipeline_mode<synchronous>, transform_indices = @transform_4, window_bounds = array<i64: 1, 128>}, {pipeline_mode = #tpu.pipeline_mode<synchronous>, transform_indices = @transform_5, window_bounds = array<i64: 1, 128>}, {transform_indices = @transform_6, window_bounds = array<i64: 1, 1>}, {transform_indices = @transform_7, window_bounds = array<i64: 16, 1>}]} {
    %c0 = arith.constant 0 : index
    %c0_0 = arith.constant 0 : index
    %0 = vector.load %arg1[%c0, %c0_0] : memref<16x256xbf16, #tpu.memory_space<vmem>>, vector<16x256xbf16>
    %c0_1 = arith.constant 0 : index
    %c0_2 = arith.constant 0 : index
    %1 = vector.load %arg2[%c0_1, %c0_2] : memref<256x128xbf16, #tpu.memory_space<vmem>>, vector<256x128xbf16>
    %cst = arith.constant dense<0.000000e+00> : vector<16x128xf32>
    %2 = tpu.matmul %0, %1, %cst {dimension_numbers = #tpu.dot_dimension_numbers<[1], [0], [0], [1], [0, 0, 1, 1], [], []>} : vector<16x256xbf16>, vector<256x128xbf16>, vector<16x128xf32> -> vector<16x128xf32>
    %c0_3 = arith.constant 0 : index
    %c0_4 = arith.constant 0 : index
    %3 = vector.load %arg3[%c0_3, %c0_4] : memref<1x128xf32, #tpu.memory_space<vmem>>, vector<1x128xf32>
    %4 = vector.broadcast %3 : vector<1x128xf32> to vector<16x128xf32>
    %5 = arith.addf %2, %4 : vector<16x128xf32>
    %cst_5 = arith.constant 0.000000e+00 : f32
    %6 = vector.broadcast %cst_5 : f32 to vector<16x128xf32>
    %7 = arith.maximumf %5, %6 : vector<16x128xf32>
    %8 = arith.truncf %7 : vector<16x128xf32> to vector<16x128xbf16>
    %c0_6 = arith.constant 0 : index
    %c0_7 = arith.constant 0 : index
    %9 = vector.load %arg4[%c0_6, %c0_7] : memref<128x128xbf16, #tpu.memory_space<vmem>>, vector<128x128xbf16>
    %cst_8 = arith.constant dense<0.000000e+00> : vector<16x128xf32>
    %10 = tpu.matmul %8, %9, %cst_8 {dimension_numbers = #tpu.dot_dimension_numbers<[1], [0], [0], [1], [0, 0, 1, 1], [], []>} : vector<16x128xbf16>, vector<128x128xbf16>, vector<16x128xf32> -> vector<16x128xf32>
    %c0_9 = arith.constant 0 : index
    %c0_10 = arith.constant 0 : index
    %11 = vector.load %arg5[%c0_9, %c0_10] : memref<1x128xf32, #tpu.memory_space<vmem>>, vector<1x128xf32>
    %12 = vector.broadcast %11 : vector<1x128xf32> to vector<16x128xf32>
    %13 = arith.addf %10, %12 : vector<16x128xf32>
    %cst_11 = arith.constant 0.000000e+00 : f32
    %14 = vector.broadcast %cst_11 : f32 to vector<16x128xf32>
    %15 = arith.maximumf %13, %14 : vector<16x128xf32>
    %c0_12 = arith.constant 0 : index
    %c0_13 = arith.constant 0 : index
    %16 = vector.load %arg6[%c0_12, %c0_13] : memref<1x128xf32, #tpu.memory_space<vmem>>, vector<1x128xf32>
    %17 = vector.broadcast %16 : vector<1x128xf32> to vector<16x128xf32>
    %18 = arith.mulf %15, %17 : vector<16x128xf32>
    %cst_14 = arith.constant dense<0.000000e+00> : vector<16xf32>
    %19 = vector.multi_reduction <add>, %18, %cst_14 [1] : vector<16x128xf32> to vector<16xf32>
    %20 = vector.shape_cast %19 : vector<16xf32> to vector<16x1xf32>
    %c0_15 = arith.constant 0 : index
    %c0_16 = arith.constant 0 : index
    %21 = memref.load %arg7[%c0_15, %c0_16] : memref<1x1xf32, #tpu.memory_space<smem>>
    %22 = vector.broadcast %21 : f32 to vector<16x1xf32>
    %23 = arith.addf %20, %22 : vector<16x1xf32>
    %c0_17 = arith.constant 0 : index
    %c0_18 = arith.constant 0 : index
    %24 = vector.load %arg8[%c0_17, %c0_18] : memref<16x1xf32, #tpu.memory_space<vmem>>, vector<16x1xf32>
    tpu.vector_store %arg8[%c0_17, %c0_18], %23 {strides = array<i32>} : memref<16x1xf32, #tpu.memory_space<vmem>>, vector<16x1xf32>,
    return
  }
  func.func @transform_0(%arg0: i32) -> (i32, i32) {
    %c0_i32 = arith.constant 0 : i32
    %c0_i32_0 = arith.constant 0 : i32
    return %arg0, %c0_i32 : i32, i32
  }
  func.func @transform_1(%arg0: i32) -> (i32, i32) {
    %c0_i32 = arith.constant 0 : i32
    %c0_i32_0 = arith.constant 0 : i32
    %c0_i32_1 = arith.constant 0 : i32
    return %c0_i32, %c0_i32_0 : i32, i32
  }
  func.func @transform_2(%arg0: i32) -> (i32, i32) {
    %c0_i32 = arith.constant 0 : i32
    %c0_i32_0 = arith.constant 0 : i32
    %c0_i32_1 = arith.constant 0 : i32
    return %c0_i32, %c0_i32_0 : i32, i32
  }
  func.func @transform_3(%arg0: i32) -> (i32, i32) {
    %c0_i32 = arith.constant 0 : i32
    %c0_i32_0 = arith.constant 0 : i32
    %c0_i32_1 = arith.constant 0 : i32
    return %c0_i32, %c0_i32_0 : i32, i32
  }
  func.func @transform_4(%arg0: i32) -> (i32, i32) {
    %c0_i32 = arith.constant 0 : i32
    %c0_i32_0 = arith.constant 0 : i32
    %c0_i32_1 = arith.constant 0 : i32
    return %c0_i32, %c0_i32_0 : i32, i32
  }
  func.func @transform_5(%arg0: i32) -> (i32, i32) {
    %c0_i32 = arith.constant 0 : i32
    %c0_i32_0 = arith.constant 0 : i32
    %c0_i32_1 = arith.constant 0 : i32
    return %c0_i32, %c0_i32_0 : i32, i32
  }
  func.func @transform_6(%arg0: i32) -> (i32, i32) {
    %c0_i32 = arith.constant 0 : i32
    %c0_i32_0 = arith.constant 0 : i32
    %c0_i32_1 = arith.constant 0 : i32
    return %c0_i32, %c0_i32_0 : i32, i32
  }
  func.func @transform_7(%arg0: i32) -> (i32, i32) {
    %c0_i32 = arith.constant 0 : i32
    %c0_i32_0 = arith.constant 0 : i32
    return %arg0, %c0_i32 : i32, i32
  }
}

</mosaic_0001>

<llo_original>
// kernel: tpu_custom_call.1
$region0: #{tpu_custom_call.1}
  #allocation0 [shape = 'u32[]', space=smem, size = 0x4, offset = 0x4, fixed_abs, tag = 'smem constant byte address 0x4 - core index']
  #allocation1 [shape = 'u32[144,128]{1,0:T(1,128)}', space=vmem, size = 0x12000, scoped, tag = 'internal scratch']
  #allocation2 [shape = 'f32[1,1]{1,0:T(1,128)S(6)}', space=smem, size = 0x200, scoped, tag = 'scoped memory for tpu_custom_call.1']
  %s0 = inlined_call_operand.hbm [shape: bf16[32,256], index: 0, kind: input, shape index: {}]
  %s1 = inlined_call_operand.hbm [shape: bf16[256,128], index: 1, kind: input, shape index: {}]
  %s2 = inlined_call_operand.vmem [shape: f32[1,128], index: 2, kind: input, shape index: {}]
  %s3 = inlined_call_operand.hbm [shape: bf16[128,128], index: 3, kind: input, shape index: {}]
  %s4 = inlined_call_operand.vmem [shape: f32[1,128], index: 4, kind: input, shape index: {}]
  %s5 = inlined_call_operand.vmem [shape: f32[1,128], index: 5, kind: input, shape index: {}]
  %s6 = inlined_call_operand.<no memory space> [shape: f32[1,1], index: 6, kind: input, shape index: {}]
  %s7 = inlined_call_operand.vmem [shape: f32[32,1], index: 7, kind: output, shape index: {}]
  %s8 = sld [smem:[#allocation0]]
  $region73: #{tpu_custom_call.1} parent=0
    _
  %s10 = ssub.s32 1, %s8
  %s11 = scalar_select 0, %s10, %s8
  %12 = sst [smem:[#allocation2]] %s6
  $region1: #{tpu_custom_call.1} parent=0
    #allocation3 [shape = 'u8[16384]{0}', space=vmem, size = 0x4000, scoped, tag = 'input window, operand 0']
    #allocation4 [shape = 's32[2]{0}', space=sflag, size = 0x8, scoped, tag = 'scoped memory for tpu_custom_call.1']
    #allocation5 [shape = 'u8[65536]{0}', space=vmem, size = 0x10000, scoped, tag = 'input window, operand 1, single buffered']
    #allocation6 [shape = 's32[1]{0}', space=sflag, size = 0x4, scoped, tag = 'scoped memory for tpu_custom_call.1']
    #allocation7 [shape = 'u8[32768]{0}', space=vmem, size = 0x8000, scoped, tag = 'input window, operand 3, single buffered']
    %13 = vsyncpa [#allocation4], 0
    %s14 = scalar_lea.sflag [#allocation4], 1
    %15 = vsyncpa %s14, 0
    %16 = vsyncpa [#allocation6], 0
    loop: start=0, step=1, limit=4
    $region2: #{tpu_custom_call.1} parent=1 // loop_pre_header
      _
    $region3: #{tpu_custom_call.1} parent=1 // loop_header
      %s18 = sphi 0, %s22
      %p19 = scmp.ge.s32.totalorder %s18, 4
      %s28 = sphi 0, %s30
      %s31 = sphi 0, %s28
      %s32 = sphi 0, %s31
      %s48 = sphi 0, %s32
      %s52 = sphi 0, %s52
      %s54 = sphi 0, %s52
      %s55 = sphi 0, %s54
      %s69 = sphi 0, %s55
      %s73 = sphi 0, %s73
      %s75 = sphi 0, %s73
      %s76 = sphi 0, %s75
      %s90 = sphi 0, %s76
      %s94 = sphi 0, %s94
      %s96 = sphi 0, %s94
      %s97 = sphi 0, %s96
      %s111 = sphi 0, %s97
      %s115 = sphi 0, %s115
      %s117 = sphi 0, %s115
      %s118 = sphi 0, %s117
      %s132 = sphi 0, %s118
      %s136 = sphi 0, %s136
      %s138 = sphi 0, %s136
      %s139 = sphi 0, %s138
      %s153 = sphi 0, %s139
      %s157 = sphi 0, %s157
      %s159 = sphi 0, %s157
      %s160 = sphi 0, %s159
      %s174 = sphi 0, %s160
      %s180 = sphi 0, %s182
      %s183 = sphi 0, %s180
      %s184 = sphi 0, %s183
      %s200 = sphi 0, %s184
    $region4: #{tpu_custom_call.1} parent=1 // loop_header_branch
      %21 = sbr.rel (%p19) target = $region8
    $region5: #{tpu_custom_call.1} parent=1 // loop_body
      %s23 = ssub.s32 %s18, 1
      %s24 = ssub.s32 %s18, 2
      %s25 = sadd.s32 %s18, 1
      %s26 = ssub.s32 %s18, %s25
      %p27 = scmp.eq.s32.totalorder %s26, 0
      %s29 = sadd.s32 %s28, 1
      %s30 = scalar_select %p27, %s28, %s29
      %p33 = pneg %p27
      %p34 = scmp.eq.s32.totalorder %s18, 1
      %p35 = por %p33, %p34
      %p36 = scmp.ne.s32.totalorder %s28, %s31
      %p37 = scmp.eq.s32.totalorder %s18, 0
      %p38 = por %p36, %p37
      %p39 = scmp.ne.s32.totalorder %s28, %s31
      %p40 = scmp.eq.s32.totalorder %s23, 1
      %p41 = por %p39, %p40
      %p42 = scmp.ne.s32.totalorder %s31, %s32
      %p43 = scmp.eq.s32.totalorder %s23, 0
      %p44 = por %p42, %p43
      %p45 = scmp.ne.s32.totalorder %s31, %s32
      %p46 = scmp.eq.s32.totalorder %s24, 1
      %p47 = por %p45, %p46
      %p49 = scmp.ne.s32.totalorder %s32, %s48
      %p50 = scmp.eq.s32.totalorder %s24, 0
      %p51 = por %p49, %p50
      %s53 = sadd.s32 %s52, 1
      %p56 = scmp.eq.s32.totalorder %s18, 1
      %p57 = scmp.ne.s32.totalorder %s52, %s54
      %p58 = scmp.eq.s32.totalorder %s18, 0
      %p59 = por %p57, %p58
      %p60 = scmp.ne.s32.totalorder %s52, %s54
      %p61 = scmp.eq.s32.totalorder %s23, 1
      %p62 = por %p60, %p61
      %p63 = scmp.ne.s32.totalorder %s54, %s55
      %p64 = scmp.eq.s32.totalorder %s23, 0
      %p65 = por %p63, %p64
      %p66 = scmp.ne.s32.totalorder %s54, %s55
      %p67 = scmp.eq.s32.totalorder %s24, 1
      %p68 = por %p66, %p67
      %p70 = scmp.ne.s32.totalorder %s55, %s69
      %p71 = scmp.eq.s32.totalorder %s24, 0
      %p72 = por %p70, %p71
      %s74 = sadd.s32 %s73, 1
      %p77 = scmp.eq.s32.totalorder %s18, 1
      %p78 = scmp.ne.s32.totalorder %s73, %s75
      %p79 = scmp.eq.s32.totalorder %s18, 0
      %p80 = por %p78, %p79
      %p81 = scmp.ne.s32.totalorder %s73, %s75
      %p82 = scmp.eq.s32.totalorder %s23, 1
      %p83 = por %p81, %p82
      %p84 = scmp.ne.s32.totalorder %s75, %s76
      %p85 = scmp.eq.s32.totalorder %s23, 0
      %p86 = por %p84, %p85
      %p87 = scmp.ne.s32.totalorder %s75, %s76
      %p88 = scmp.eq.s32.totalorder %s24, 1
      %p89 = por %p87, %p88
      %p91 = scmp.ne.s32.totalorder %s76, %s90
      %p92 = scmp.eq.s32.totalorder %s24, 0
      %p93 = por %p91, %p92
      %s95 = sadd.s32 %s94, 1
      %p98 = scmp.eq.s32.totalorder %s18, 1
      %p99 = scmp.ne.s32.totalorder %s94, %s96
      %p100 = scmp.eq.s32.totalorder %s18, 0
      %p101 = por %p99, %p100
      %p102 = scmp.ne.s32.totalorder %s94, %s96
      %p103 = scmp.eq.s32.totalorder %s23, 1
      %p104 = por %p102, %p103
      %p105 = scmp.ne.s32.totalorder %s96, %s97
      %p106 = scmp.eq.s32.totalorder %s23, 0
      %p107 = por %p105, %p106
      %p108 = scmp.ne.s32.totalorder %s96, %s97
      %p109 = scmp.eq.s32.totalorder %s24, 1
      %p110 = por %p108, %p109
      %p112 = scmp.ne.s32.totalorder %s97, %s111
      %p113 = scmp.eq.s32.totalorder %s24, 0
      %p114 = por %p112, %p113
      %s116 = sadd.s32 %s115, 1
      %p119 = scmp.eq.s32.totalorder %s18, 1
      %p120 = scmp.ne.s32.totalorder %s115, %s117
      %p121 = scmp.eq.s32.totalorder %s18, 0
      %p122 = por %p120, %p121
      %p123 = scmp.ne.s32.totalorder %s115, %s117
      %p124 = scmp.eq.s32.totalorder %s23, 1
      %p125 = por %p123, %p124
      %p126 = scmp.ne.s32.totalorder %s117, %s118
      %p127 = scmp.eq.s32.totalorder %s23, 0
      %p128 = por %p126, %p127
      %p129 = scmp.ne.s32.totalorder %s117, %s118
      %p130 = scmp.eq.s32.totalorder %s24, 1
      %p131 = por %p129, %p130
      %p133 = scmp.ne.s32.totalorder %s118, %s132
      %p134 = scmp.eq.s32.totalorder %s24, 0
      %p135 = por %p133, %p134
      %s137 = sadd.s32 %s136, 1
      %p140 = scmp.eq.s32.totalorder %s18, 1
      %p141 = scmp.ne.s32.totalorder %s136, %s138
      %p142 = scmp.eq.s32.totalorder %s18, 0
      %p143 = por %p141, %p142
      %p144 = scmp.ne.s32.totalorder %s136, %s138
      %p145 = scmp.eq.s32.totalorder %s23, 1
      %p146 = por %p144, %p145
      %p147 = scmp.ne.s32.totalorder %s138, %s139
      %p148 = scmp.eq.s32.totalorder %s23, 0
      %p149 = por %p147, %p148
      %p150 = scmp.ne.s32.totalorder %s138, %s139
      %p151 = scmp.eq.s32.totalorder %s24, 1
      %p152 = por %p150, %p151
      %p154 = scmp.ne.s32.totalorder %s139, %s153
      %p155 = scmp.eq.s32.totalorder %s24, 0
      %p156 = por %p154, %p155
      %s158 = sadd.s32 %s157, 1
      %p161 = scmp.eq.s32.totalorder %s18, 1
      %p162 = scmp.ne.s32.totalorder %s157, %s159
      %p163 = scmp.eq.s32.totalorder %s18, 0
      %p164 = por %p162, %p163
      %p165 = scmp.ne.s32.totalorder %s157, %s159
      %p166 = scmp.eq.s32.totalorder %s23, 1
      %p167 = por %p165, %p166
      %p168 = scmp.ne.s32.totalorder %s159, %s160
      %p169 = scmp.eq.s32.totalorder %s23, 0
      %p170 = por %p168, %p169
      %p171 = scmp.ne.s32.totalorder %s159, %s160
      %p172 = scmp.eq.s32.totalorder %s24, 1
      %p173 = por %p171, %p172
      %p175 = scmp.ne.s32.totalorder %s160, %s174
      %p176 = scmp.eq.s32.totalorder %s24, 0
      %p177 = por %p175, %p176
      %s178 = ssub.s32 %s18, %s25
      %p179 = scmp.eq.s32.totalorder %s178, 0
      %s181 = sadd.s32 %s180, 1
      %s182 = scalar_select %p179, %s180, %s181
      %p185 = pneg %p179
      %p186 = scmp.eq.s32.totalorder %s18, 1
      %p187 = por %p185, %p186
      %p188 = scmp.ne.s32.totalorder %s180, %s183
      %p189 = scmp.eq.s32.totalorder %s18, 0
      %p190 = por %p188, %p189
      %p191 = scmp.ne.s32.totalorder %s180, %s183
      %p192 = scmp.eq.s32.totalorder %s23, 1
      %p193 = por %p191, %p192
      %p194 = scmp.ne.s32.totalorder %s183, %s184
      %p195 = scmp.eq.s32.totalorder %s23, 0
      %p196 = por %p194, %p195
      %p197 = scmp.ne.s32.totalorder %s183, %s184
      %p198 = scmp.eq.s32.totalorder %s24, 1
      %p199 = por %p197, %p198
      %p201 = scmp.ne.s32.totalorder %s184, %s200
      %p202 = scmp.eq.s32.totalorder %s24, 0
      %p203 = por %p201, %p202
      %p204 = scmp.le.s32.totalorder 1, %s18
      %p205 = scmp.lt.s32.totalorder %s18, 3
      %p206 = pnand %p204, %p205
      %p207 = pneg %p206
      // Predicated region
      $region9: #{tpu_custom_call.1} parent=5 // pred_check
        _
      $region10: #{tpu_custom_call.1} parent=5 // pred_check_branch
        %209 = sbr.rel (%p206) target = $region12
      $region11: #{tpu_custom_call.1} parent=5 // pred_region
        %s210 = ssub.s32 %s18, 1
        // Predicated region
        $region13: #{tpu_custom_call.1} parent=11 // pred_check
          %p211 = pneg %p65
        $region14: #{tpu_custom_call.1} parent=11 // pred_check_branch
          %213 = sbr.rel (%p211) target = $region16
        $region15: #{tpu_custom_call.1} parent=11 // pred_region
          %s215 = ssub.s32 2048, 2048
          %216 = vsyncadd [#allocation6], %s215
          %s217 = sshll.u32 [#allocation5], 4
          %s218 = int_to_ptr.vmem [resolvable:$true] %s217
          %223 = dma.hbm_to_vmem [thread:$0]  %s1, 2048, %s218, [#allocation6], 64, 64, 4
        $region16: #{tpu_custom_call.1} parent=11 // pred_fallthru
          _
        // Predicated region
        $region17: #{tpu_custom_call.1} parent=11 // pred_check
          %p224 = pneg %p86
        $region18: #{tpu_custom_call.1} parent=11 // pred_check_branch
          %226 = sbr.rel (%p224) target = $region20
        $region19: #{tpu_custom_call.1} parent=11 // pred_region
          _
        $region20: #{tpu_custom_call.1} parent=11 // pred_fallthru
          _
        // Predicated region
        $region21: #{tpu_custom_call.1} parent=11 // pred_check
          %p227 = pneg %p107
        $region22: #{tpu_custom_call.1} parent=11 // pred_check_branch
          %229 = sbr.rel (%p227) target = $region24
        $region23: #{tpu_custom_call.1} parent=11 // pred_region
          %s231 = ssub.s32 1024, 1024
          %232 = vsyncadd [#allocation6], %s231
          %s233 = sshll.u32 [#allocation7], 4
          %s234 = int_to_ptr.vmem [resolvable:$true] %s233
          %239 = dma.hbm_to_vmem [thread:$0]  %s3, 1024, %s234, [#allocation6], 64, 64, 4
        $region24: #{tpu_custom_call.1} parent=11 // pred_fallthru
          _
        // Predicated region
        $region25: #{tpu_custom_call.1} parent=11 // pred_check
          %p240 = pneg %p128
        $region26: #{tpu_custom_call.1} parent=11 // pred_check_branch
          %242 = sbr.rel (%p240) target = $region28
        $region27: #{tpu_custom_call.1} parent=11 // pred_region
          _
        $region28: #{tpu_custom_call.1} parent=11 // pred_fallthru
          _
        // Predicated region
        $region29: #{tpu_custom_call.1} parent=11 // pred_check
          %p243 = pneg %p149
        $region30: #{tpu_custom_call.1} parent=11 // pred_check_branch
          %245 = sbr.rel (%p243) target = $region32
        $region31: #{tpu_custom_call.1} parent=11 // pred_region
          _
        $region32: #{tpu_custom_call.1} parent=11 // pred_fallthru
          _
        // Predicated region
        $region33: #{tpu_custom_call.1} parent=11 // pred_check
          %p246 = pneg %p170
        $region34: #{tpu_custom_call.1} parent=11 // pred_check_branch
          %248 = sbr.rel (%p246) target = $region36
        $region35: #{tpu_custom_call.1} parent=11 // pred_region
          _
        $region36: #{tpu_custom_call.1} parent=11 // pred_fallthru
          _
      $region12: #{tpu_custom_call.1} parent=5 // pred_fallthru
        _
      %p249 = scmp.lt.s32.totalorder %s18, 2
      // Predicated region
      $region37: #{tpu_custom_call.1} parent=5 // pred_check
        %p250 = pneg %p249
      $region38: #{tpu_custom_call.1} parent=5 // pred_check_branch
        %252 = sbr.rel (%p250) target = $region40
      $region39: #{tpu_custom_call.1} parent=5 // pred_region
        // Predicated region
        $region41: #{tpu_custom_call.1} parent=39 // pred_check
          %p253 = pneg %p38
        $region42: #{tpu_custom_call.1} parent=39 // pred_check_branch
          %255 = sbr.rel (%p253) target = $region44
        $region43: #{tpu_custom_call.1} parent=39 // pred_region
          %s256 = sand.u32 %s28, 1
          %s257 = scalar_lea.sflag [#allocation4], %s256
          %s258 = sand.u32 %s28, 1
          %s259 = smul.addr %s258, 16
          %s260 = scalar_lea.vmem [#allocation3], %s259
          %s261 = smul.u32 2, %s18
          %s263 = ssub.s32 256, 256
          %264 = vsyncadd %s257, %s263
          %s265 = smul.addr %s261, 2
          %s266 = smul.addr %s265, 64
          %s267 = scalar_lea.hbm %s0, %s266
          %s268 = sshll.u32 %s260, 4
          %s269 = int_to_ptr.vmem [resolvable:$true] %s268
          %274 = dma.hbm_to_vmem [thread:$0]  %s267, 256, %s269, %s257, 128, 128, 8
        $region44: #{tpu_custom_call.1} parent=39 // pred_fallthru
          _
      $region40: #{tpu_custom_call.1} parent=5 // pred_fallthru
        _
      %p275 = scmp.le.s32.totalorder 1, %s18
      %p276 = scmp.lt.s32.totalorder %s18, 3
      %p277 = pnand %p275, %p276
      %p278 = pneg %p277
      // Predicated region
      $region45: #{tpu_custom_call.1} parent=5 // pred_check
        _
      $region46: #{tpu_custom_call.1} parent=5 // pred_check_branch
        %280 = sbr.rel (%p277) target = $region48
      $region47: #{tpu_custom_call.1} parent=5 // pred_region
        %s281 = ssub.s32 %s18, 1
        %s282 = sand.u32 %s31, 1
        %s283 = scalar_lea.sflag [#allocation4], %s282
        %s284 = sand.u32 %s31, 1
        %s285 = smul.addr %s284, 16
        %s286 = scalar_lea.vmem [#allocation3], %s285
        // Predicated region
        $region49: #{tpu_custom_call.1} parent=47 // pred_check
          %p287 = pneg %p44
        $region50: #{tpu_custom_call.1} parent=47 // pred_check_branch
          %289 = sbr.rel (%p287) target = $region52
        $region51: #{tpu_custom_call.1} parent=47 // pred_region
          %290 = dma.done %s283, 256
        $region52: #{tpu_custom_call.1} parent=47 // pred_fallthru
          _
        // Predicated region
        $region53: #{tpu_custom_call.1} parent=47 // pred_check
          %p291 = pneg %p65
        $region54: #{tpu_custom_call.1} parent=47 // pred_check_branch
          %293 = sbr.rel (%p291) target = $region56
        $region55: #{tpu_custom_call.1} parent=47 // pred_region
          %294 = dma.done [#allocation6], 2048
        $region56: #{tpu_custom_call.1} parent=47 // pred_fallthru
          _
        // Predicated region
        $region57: #{tpu_custom_call.1} parent=47 // pred_check
          %p295 = pneg %p107
        $region58: #{tpu_custom_call.1} parent=47 // pred_check_branch
          %297 = sbr.rel (%p295) target = $region60
        $region59: #{tpu_custom_call.1} parent=47 // pred_region
          %298 = dma.done [#allocation6], 1024
        $region60: #{tpu_custom_call.1} parent=47 // pred_fallthru
          _
        %s299 = sand.u32 %s31, 1
        %s300 = scalar_lea.sflag [#allocation4], %s299
        %s301 = sand.u32 %s31, 1
        %s302 = smul.addr %s301, 16
        %s303 = scalar_lea.vmem [#allocation3], %s302
        %p304 = pneg %p44
        %p305 = pneg %p41
        %p306 = pneg %p65
        %p307 = pneg %p62
        %p308 = pneg %p86
        %p309 = pneg %p83
        %p310 = pneg %p107
        %p311 = pneg %p104
        %p312 = pneg %p128
        %p313 = pneg %p125
        %p314 = pneg %p149
        %p315 = pneg %p146
        %p316 = pneg %p170
        %p317 = pneg %p167
        %p318 = pneg %p196
        %p319 = pneg %p193
        %s320 = smul.u32 2, %s23
        %p321 = scmp.lt.s32.totalorder %s320, 3
        %s322 = scalar_select %p321, %s320, 3
        %s323 = smul.addr %s322, 8
        %s324 = scalar_lea.vmem %s7, %s323
        %s325 = smul.u32 2, %s23
        %s326 = smul.u32 2, %s23
        %p327 = scmp.lt.s32.totalorder %s326, 3
        %s328 = scalar_select %p327, %s326, 3
        %s329 = smul.addr %s328, 8
        %s330 = scalar_lea.vmem %s7, %s329
        %s331 = smul.u32 2, %s23
        %v333 = vld [vmem:[%s286] sm:$0xff]
        %v334 = vld [vmem:[%s286 + $0x8] sm:$0xff]
        %v335 = vld [vmem:[#allocation5] sm:$0xf]
        %v336 = vld [vmem:[#allocation5 + $0x4] sm:$0xf]
        %v337 = vld [vmem:[#allocation5 + $0x8] sm:$0xf]
        %v338 = vld [vmem:[#allocation5 + $0xc] sm:$0xf]
        %v339 = vld [vmem:[#allocation5 + $0x10] sm:$0xf]
        %v340 = vld [vmem:[#allocation5 + $0x14] sm:$0xf]
        %v341 = vld [vmem:[#allocation5 + $0x18] sm:$0xf]
        %v342 = vld [vmem:[#allocation5 + $0x1c] sm:$0xf]
        %v343 = vld [vmem:[#allocation5 + $0x20] sm:$0xf]
        %v344 = vld [vmem:[#allocation5 + $0x24] sm:$0xf]
        %v345 = vld [vmem:[#allocation5 + $0x28] sm:$0xf]
        %v346 = vld [vmem:[#allocation5 + $0x2c] sm:$0xf]
        %v347 = vld [vmem:[#allocation5 + $0x30] sm:$0xf]
        %v348 = vld [vmem:[#allocation5 + $0x34] sm:$0xf]
        %v349 = vld [vmem:[#allocation5 + $0x38] sm:$0xf]
        %v350 = vld [vmem:[#allocation5 + $0x3c] sm:$0xf]
        %v351 = vld [vmem:[#allocation5 + $0x40] sm:$0xf]
        %v352 = vld [vmem:[#allocation5 + $0x44] sm:$0xf]
        %v353 = vld [vmem:[#allocation5 + $0x48] sm:$0xf]
        %v354 = vld [vmem:[#allocation5 + $0x4c] sm:$0xf]
        %v355 = vld [vmem:[#allocation5 + $0x50] sm:$0xf]
        %v356 = vld [vmem:[#allocation5 + $0x54] sm:$0xf]
        %v357 = vld [vmem:[#allocation5 + $0x58] sm:$0xf]
        %v358 = vld [vmem:[#allocation5 + $0x5c] sm:$0xf]
        %v359 = vld [vmem:[#allocation5 + $0x60] sm:$0xf]
        %v360 = vld [vmem:[#allocation5 + $0x64] sm:$0xf]
        %v361 = vld [vmem:[#allocation5 + $0x68] sm:$0xf]
        %v362 = vld [vmem:[#allocation5 + $0x6c] sm:$0xf]
        %v363 = vld [vmem:[#allocation5 + $0x70] sm:$0xf]
        %v364 = vld [vmem:[#allocation5 + $0x74] sm:$0xf]
        %v365 = vld [vmem:[#allocation5 + $0x78] sm:$0xf]
        %v366 = vld [vmem:[#allocation5 + $0x7c] sm:$0xf]
        %v367 = vld [vmem:[%s2] sm:$0x1]
        %v369 = vlaneseq
        %v370 = vshrl.u32 %v369, 7
        %v371 = vsub.s32 0, %v370
        %v372 = vrot.slane %v367, %v371
        %v376 = vunpack.c.l.b16 %v333
        %v377 = vunpack.c.h.b16 %v333
        %v378 = vunpack.c.l.b16 %v334
        %v379 = vunpack.c.h.b16 %v334
        %v380 = vpack.c.b16 %v378, %v376
        %v381 = vpack.c.b16 %v379, %v377
        %v416 = vunpack.c.l.b16 %v335
        %v417 = vunpack.c.l.b16 %v336
        %v418 = vunpack.c.l.b16 %v337
        %v419 = vunpack.c.l.b16 %v338
        %v420 = vunpack.c.l.b16 %v339
        %v421 = vunpack.c.l.b16 %v340
        %v422 = vunpack.c.l.b16 %v341
        %v423 = vunpack.c.l.b16 %v342
        %v424 = vunpack.c.l.b16 %v343
        %v425 = vunpack.c.l.b16 %v344
        %v426 = vunpack.c.l.b16 %v345
        %v427 = vunpack.c.l.b16 %v346
        %v428 = vunpack.c.l.b16 %v347
        %v429 = vunpack.c.l.b16 %v348
        %v430 = vunpack.c.l.b16 %v349
        %v431 = vunpack.c.l.b16 %v350
        %v432 = vunpack.c.l.b16 %v351
        %v433 = vunpack.c.l.b16 %v352
        %v434 = vunpack.c.l.b16 %v353
        %v435 = vunpack.c.l.b16 %v354
        %v436 = vunpack.c.l.b16 %v355
        %v437 = vunpack.c.l.b16 %v356
        %v438 = vunpack.c.l.b16 %v357
        %v439 = vunpack.c.l.b16 %v358
        %v440 = vunpack.c.l.b16 %v359
        %v441 = vunpack.c.l.b16 %v360
        %v442 = vunpack.c.l.b16 %v361
        %v443 = vunpack.c.l.b16 %v362
        %v444 = vunpack.c.l.b16 %v363
        %v445 = vunpack.c.l.b16 %v364
        %v446 = vunpack.c.l.b16 %v365
        %v447 = vunpack.c.l.b16 %v366
        %v448 = vpack.c.b16 %v417, %v416
        %v449 = vpack.c.b16 %v419, %v418
        %v450 = vpack.c.b16 %v421, %v420
        %v451 = vpack.c.b16 %v423, %v422
        %v452 = vpack.c.b16 %v425, %v424
        %v453 = vpack.c.b16 %v427, %v426
        %v454 = vpack.c.b16 %v429, %v428
        %v455 = vpack.c.b16 %v431, %v430
        %v456 = vpack.c.b16 %v433, %v432
        %v457 = vpack.c.b16 %v435, %v434
        %v458 = vpack.c.b16 %v437, %v436
        %v459 = vpack.c.b16 %v439, %v438
        %v460 = vpack.c.b16 %v441, %v440
        %v461 = vpack.c.b16 %v443, %v442
        %v462 = vpack.c.b16 %v445, %v444
        %v463 = vpack.c.b16 %v447, %v446
        %480 = vmatprep.subr.bf16.mxu0 0
        %481 = vmatpush1.bf16.msra.mxu0 %v448
        %482 = vmatprep.subr.bf16.mxu0 0
        %483 = vmatpush1.bf16.msra.mxu0 %v449
        %484 = vmatprep.subr.bf16.mxu0 0
        %485 = vmatpush1.bf16.msra.mxu0 %v450
        %486 = vmatprep.subr.bf16.mxu0 0
        %487 = vmatpush1.bf16.msra.mxu0 %v451
        %488 = vmatprep.subr.bf16.mxu0 0
        %489 = vmatpush1.bf16.msra.mxu0 %v452
        %490 = vmatprep.subr.bf16.mxu0 0
        %491 = vmatpush1.bf16.msra.mxu0 %v453
        %492 = vmatprep.subr.bf16.mxu0 0
        %493 = vmatpush1.bf16.msra.mxu0 %v454
        %494 = vmatprep.subr.bf16.mxu0 0
        %495 = vmatpush1.bf16.msra.mxu0 %v455
        %496 = vmatprep.subr.bf16.mxu0 0
        %497 = vmatpush1.bf16.msra.mxu0 %v456
        %498 = vmatprep.subr.bf16.mxu0 0
        %499 = vmatpush1.bf16.msra.mxu0 %v457
        %500 = vmatprep.subr.bf16.mxu0 0
        %501 = vmatpush1.bf16.msra.mxu0 %v458
        %502 = vmatprep.subr.bf16.mxu0 0
        %503 = vmatpush1.bf16.msra.mxu0 %v459
        %504 = vmatprep.subr.bf16.mxu0 0
        %505 = vmatpush1.bf16.msra.mxu0 %v460
        %506 = vmatprep.subr.bf16.mxu0 0
        %507 = vmatpush1.bf16.msra.mxu0 %v461
        %508 = vmatprep.subr.bf16.mxu0 0
        %509 = vmatpush1.bf16.msra.mxu0 %v462
        %510 = vmatprep.subr.bf16.mxu0 0
        %511 = vmatpush1.bf16.msra.mxu0 %v463
        %512 = vmatprep.mubr.bf16.mxu0 %v381
        %513 = vmatmul.mubr.bf16.gmra.mrb[0].mxu0 %v380
        %v514 = vpop.f32.mrb[0].mxu0
        %v515 = vadd.f32 %v372, %v514
        %v516 = vpop.f32.mrb[0].mxu0
        %v517 = vpop.f32.mrb[0].mxu0
        %v518 = vadd.f32 %v372, %v517
        %v519 = vpop.f32.mrb[0].mxu0
        %520 = vdwg.mxu0
        %v521 = vmax.f32 %v515, 0.0
        %v522 = vmax.f32 %v518, 0.0
        %v523 = vpack.c.bf16 %v522, %v521
        %v524 = vld [vmem:[#allocation7] sm:$0xf]
        %v525 = vld [vmem:[#allocation7 + $0x4] sm:$0xf]
        %v526 = vld [vmem:[#allocation7 + $0x8] sm:$0xf]
        %v527 = vld [vmem:[#allocation7 + $0xc] sm:$0xf]
        %v528 = vld [vmem:[#allocation7 + $0x10] sm:$0xf]
        %v529 = vld [vmem:[#allocation7 + $0x14] sm:$0xf]
        %v530 = vld [vmem:[#allocation7 + $0x18] sm:$0xf]
        %v531 = vld [vmem:[#allocation7 + $0x1c] sm:$0xf]
        %v532 = vld [vmem:[#allocation7 + $0x20] sm:$0xf]
        %v533 = vld [vmem:[#allocation7 + $0x24] sm:$0xf]
        %v534 = vld [vmem:[#allocation7 + $0x28] sm:$0xf]
        %v535 = vld [vmem:[#allocation7 + $0x2c] sm:$0xf]
        %v536 = vld [vmem:[#allocation7 + $0x30] sm:$0xf]
        %v537 = vld [vmem:[#allocation7 + $0x34] sm:$0xf]
        %v538 = vld [vmem:[#allocation7 + $0x38] sm:$0xf]
        %v539 = vld [vmem:[#allocation7 + $0x3c] sm:$0xf]
        %v540 = vld [vmem:[%s4] sm:$0x1]
        %v542 = vlaneseq
        %v543 = vshrl.u32 %v542, 7
        %v544 = vsub.s32 0, %v543
        %v545 = vrot.slane %v540, %v544
        %v563 = vunpack.c.l.b16 %v524
        %v564 = vunpack.c.l.b16 %v525
        %v565 = vunpack.c.l.b16 %v526
        %v566 = vunpack.c.l.b16 %v527
        %v567 = vunpack.c.l.b16 %v528
        %v568 = vunpack.c.l.b16 %v529
        %v569 = vunpack.c.l.b16 %v530
        %v570 = vunpack.c.l.b16 %v531
        %v571 = vunpack.c.l.b16 %v532
        %v572 = vunpack.c.l.b16 %v533
        %v573 = vunpack.c.l.b16 %v534
        %v574 = vunpack.c.l.b16 %v535
        %v575 = vunpack.c.l.b16 %v536
        %v576 = vunpack.c.l.b16 %v537
        %v577 = vunpack.c.l.b16 %v538
        %v578 = vunpack.c.l.b16 %v539
        %v579 = vpack.c.b16 %v564, %v563
        %v580 = vpack.c.b16 %v566, %v565
        %v581 = vpack.c.b16 %v568, %v567
        %v582 = vpack.c.b16 %v570, %v569
        %v583 = vpack.c.b16 %v572, %v571
        %v584 = vpack.c.b16 %v574, %v573
        %v585 = vpack.c.b16 %v576, %v575
        %v586 = vpack.c.b16 %v578, %v577
        %595 = vmatprep.subr.bf16.mxu0 0
        %596 = vmatpush1.bf16.msra.mxu0 %v579
        %597 = vmatprep.subr.bf16.mxu0 0
        %598 = vmatpush1.bf16.msra.mxu0 %v580
        %599 = vmatprep.subr.bf16.mxu0 0
        %600 = vmatpush1.bf16.msra.mxu0 %v581
        %601 = vmatprep.subr.bf16.mxu0 0
        %602 = vmatpush1.bf16.msra.mxu0 %v582
        %603 = vmatprep.subr.bf16.mxu0 0
        %604 = vmatpush1.bf16.msra.mxu0 %v583
        %605 = vmatprep.subr.bf16.mxu0 0
        %606 = vmatpush1.bf16.msra.mxu0 %v584
        %607 = vmatprep.subr.bf16.mxu0 0
        %608 = vmatpush1.bf16.msra.mxu0 %v585
        %609 = vmatprep.subr.bf16.mxu0 0
        %610 = vmatpush1.bf16.msra.mxu0 %v586
        %611 = vmatprep.subr.bf16.mxu0 0
        %612 = vmatpush1.bf16.msra.mxu0 0
        %613 = vmatprep.subr.bf16.mxu0 0
        %614 = vmatpush1.bf16.msra.mxu0 0
        %615 = vmatprep.subr.bf16.mxu0 0
        %616 = vmatpush1.bf16.msra.mxu0 0
        %617 = vmatprep.subr.bf16.mxu0 0
        %618 = vmatpush1.bf16.msra.mxu0 0
        %619 = vmatprep.subr.bf16.mxu0 0
        %620 = vmatpush1.bf16.msra.mxu0 0
        %621 = vmatprep.subr.bf16.mxu0 0
        %622 = vmatpush1.bf16.msra.mxu0 0
        %623 = vmatprep.subr.bf16.mxu0 0
        %624 = vmatpush1.bf16.msra.mxu0 0
        %625 = vmatprep.subr.bf16.mxu0 0
        %626 = vmatpush1.bf16.msra.mxu0 0
        %627 = vmatprep.mubr.bf16.mxu0 0
        %628 = vmatmul.mubr.bf16.gmra.mrb[0].mxu0 %v523
        %v629 = vpop.f32.mrb[0].mxu0
        %v630 = vadd.f32 %v545, %v629
        %v631 = vpop.f32.mrb[0].mxu0
        %v632 = vpop.f32.mrb[0].mxu0
        %v633 = vadd.f32 %v545, %v632
        %v634 = vpop.f32.mrb[0].mxu0
        %635 = vdwg.mxu0
        %v636 = vmax.f32 %v630, 0.0
        %v637 = vmax.f32 %v633, 0.0
        %v638 = vld [vmem:[%s5] sm:$0x1]
        %v640 = vlaneseq
        %v641 = vshrl.u32 %v640, 7
        %v642 = vsub.s32 0, %v641
        %v643 = vrot.slane %v638, %v642
        %v645 = vmul.f32 %v636, %v643
        %v646 = vmul.f32 %v637, %v643
        %647 = vadd.xlane.f32.xlu0 %v645
        %v648 = vpop.xlane.xlu0 %647
        %649 = vadd.xlane.f32.xlu0 %v646
        %v650 = vpop.xlane.xlu0 %649
        %s651 = sld [smem:[#allocation2]]
        %v652 = vstv %s651
        %v653 = vadd.f32 %v648, %v652
        %v654 = vadd.f32 %v650, %v652
        %vm655 = vcmask 7168
        %656 = vst.msk [vmem:[%s330] sm:$0xff] %vm655, %v653
        %657 = vst.msk [vmem:[%s330 + $0x8] sm:$0xff] %vm655, %v654
        %s658 = smul.u32 2, %s23
        %p659 = scmp.lt.s32.totalorder %s658, 3
        %s660 = scalar_select %p659, %s658, 3
        %s661 = smul.addr %s660, 8
        %s662 = scalar_lea.vmem %s7, %s661
        // Predicated region
        $region61: #{tpu_custom_call.1} parent=47 // pred_check
          %p663 = pneg %p193
        $region62: #{tpu_custom_call.1} parent=47 // pred_check_branch
          %665 = sbr.rel (%p663) target = $region64
        $region63: #{tpu_custom_call.1} parent=47 // pred_region
          %s666 = smul.u32 2, %s23
        $region64: #{tpu_custom_call.1} parent=47 // pred_fallthru
          _
      $region48: #{tpu_custom_call.1} parent=5 // pred_fallthru
        _
      %p667 = scmp.le.s32.totalorder 2, %s18
      // Predicated region
      $region65: #{tpu_custom_call.1} parent=5 // pred_check
        %p668 = pneg %p667
      $region66: #{tpu_custom_call.1} parent=5 // pred_check_branch
        %670 = sbr.rel (%p668) target = $region68
      $region67: #{tpu_custom_call.1} parent=5 // pred_region
        %s671 = ssub.s32 %s18, 2
        // Predicated region
        $region69: #{tpu_custom_call.1} parent=67 // pred_check
          %p672 = pneg %p199
        $region70: #{tpu_custom_call.1} parent=67 // pred_check_branch
          %674 = sbr.rel (%p672) target = $region72
        $region71: #{tpu_custom_call.1} parent=67 // pred_region
          %s675 = smul.u32 2, %s24
          %p676 = scmp.lt.s32.totalorder %s675, 3
          %s677 = scalar_select %p676, %s675, 3
          %s678 = smul.addr %s677, 8
          %s679 = scalar_lea.vmem %s7, %s678
        $region72: #{tpu_custom_call.1} parent=67 // pred_fallthru
          _
      $region68: #{tpu_custom_call.1} parent=5 // pred_fallthru
        _
    $region6: #{tpu_custom_call.1} parent=1 // loop_footer
      %s22 = sadd.s32 1, %s18
    $region7: #{tpu_custom_call.1} parent=1 // loop_footer_branch
      %17 = sbr.rel target = $region3
    $region8: #{tpu_custom_call.1} parent=1 // loop_exit
      _
    %680 = vsyncpa [#allocation4], 1
    %s681 = scalar_lea.sflag [#allocation4], 1
    %682 = vsyncpa %s681, 1
    %683 = vsyncpa [#allocation6], 1

</llo_original>
